<compile_context>
chip_gen: v5e
topology: v5e:2x2
jax: 0.10.0
libtpu: 0.0.40
codegen_flags: <defaults>
</compile_context>

<pallas_src>
import jax
import jax.numpy as jnp
from jax.experimental import pallas as pl
from jax.experimental.pallas import tpu as pltpu

# Logical dims of the PyTorch module.
IN_DIM = 2
HID_DIM = 50
OUT_DIM = 3

# Padded, TPU-friendly dims (done once at param-prep time).
HID_PAD = 64     # hidden dim, multiple of 8 (sublane) / MXU contraction dim
OUT_PAD = 8      # narrow output slab: 8 lanes hold the 3 real logits

TILE_B = 4096    # batch tile for large-B (training-style) calls


def _round_up(n, m):
    return -(-n // m) * m


def _mlp_kernel(x_ref, w1_ref, b1_ref, w2_ref, b2_ref, o_ref):
    """Fused 2-layer MLP on one batch tile: relu(x @ W1 + b1) @ W2 + b2.

    Shapes (all f32, aligned via full-dim blocks):
      x : (tile_b, 2)    w1: (2, 64)    b1: (1, 64)
                         w2: (64, 8)    b2: (1, 8)
      o : (tile_b, 8)    (real logits live in lanes 0..2)
    """
    x = x_ref[...]                       # (tile_b, 2)
    w1 = w1_ref[...]                     # (2, 64)

    # Layer 1: K=2 contraction as two VPU broadcast-FMAs — avoids a wasted
    # MXU push/drain for a degenerate matmul; lands in otherwise-idle VALU.
    h = (x[:, 0:1] * w1[0:1, :]
         + x[:, 1:2] * w1[1:2, :]
         + b1_ref[...])                  # (tile_b, 64)
    h = jnp.maximum(h, 0.0)

    # Layer 2 on the MXU: (tile_b, 64) @ (64, 8) + bias.
    y = jnp.dot(h, w2_ref[...], preferred_element_type=jnp.float32) + b2_ref[...]
    o_ref[...] = y


def prepare_params(w1, b1, w2, b2):
    """One-time prep: transpose to (in, out) and zero-pad to aligned shapes.

    Inputs follow the PyTorch nn.Linear convention:
      w1: (50, 2), b1: (50,), w2: (3, 50), b2: (3,)
    Zero padding is numerically inert through matmul + bias + ReLU.
    """
    w1 = jnp.asarray(w1, jnp.float32)
    b1 = jnp.asarray(b1, jnp.float32)
    w2 = jnp.asarray(w2, jnp.float32)
    b2 = jnp.asarray(b2, jnp.float32)

    w1_p = jnp.zeros((IN_DIM, HID_PAD), jnp.float32).at[:, :HID_DIM].set(w1.T)
    b1_p = jnp.zeros((1, HID_PAD), jnp.float32).at[0, :HID_DIM].set(b1)
    w2_p = jnp.zeros((HID_PAD, OUT_PAD), jnp.float32).at[:HID_DIM, :OUT_DIM].set(w2.T)
    b2_p = jnp.zeros((1, OUT_PAD), jnp.float32).at[0, :OUT_DIM].set(b2)
    return w1_p, b1_p, w2_p, b2_p


@jax.jit
def net_forward(x, w1_p, b1_p, w2_p, b2_p):
    """x: (B, 2) f32 states. Returns (B, 3) action values."""
    x = jnp.asarray(x, jnp.float32)
    B = x.shape[0]

    # Batch tiling (static under jit):
    #   * B < 16: one full-array tile (block dims == array dims -> legal),
    #     no padding, no extra grid steps — the DQN act() path.
    #   * 16 <= B <= TILE_B: split into >= 2 "parallel" tiles so v7x's second
    #     TensorCore gets work (no measurable cost on v5e/v6e).
    #   * B > TILE_B: 4096-row tiles to amortize the ~0.35 us/step overhead.
    if B < 16:
        tile_b = B
    elif B <= TILE_B:
        tile_b = _round_up(-(-B // 2), 8)
    else:
        tile_b = TILE_B
    b_pad = _round_up(B, tile_b)

    # Row-only padding, and only when B doesn't divide the tile (cheap: 2
    # floats/row; absent entirely on the common act()/power-of-two paths).
    if b_pad != B:
        x_in = jnp.zeros((b_pad, IN_DIM), jnp.float32).at[:B, :].set(x)
    else:
        x_in = x

    grid = (b_pad // tile_b,)

    y = pl.pallas_call(
        _mlp_kernel,
        out_shape=jax.ShapeDtypeStruct((b_pad, OUT_PAD), jnp.float32),
        grid=grid,
        in_specs=[
            pl.BlockSpec((tile_b, IN_DIM), lambda i: (i, 0)),
            pl.BlockSpec((IN_DIM, HID_PAD), lambda i: (0, 0)),
            pl.BlockSpec((1, HID_PAD), lambda i: (0, 0)),
            pl.BlockSpec((HID_PAD, OUT_PAD), lambda i: (0, 0)),
            pl.BlockSpec((1, OUT_PAD), lambda i: (0, 0)),
        ],
        out_specs=pl.BlockSpec((tile_b, OUT_PAD), lambda i: (i, 0)),
        compiler_params=pltpu.CompilerParams(
            dimension_semantics=("parallel",)),
    )(x_in, w1_p, b1_p, w2_p, b2_p)

    # Slice back to the logical (B, 3) result (stays inside the same jit).
    return y[:B, :OUT_DIM]


def init_params(key):
    """Deterministic synthetic parameters matching the module's shapes.

    Weights ~ N(0, 0.1) as in Net.__init__; biases from a small uniform
    (stand-in for PyTorch's default bias init — exact dist irrelevant here).
    """
    k1, k2, k3, k4 = jax.random.split(key, 4)
    w1 = 0.1 * jax.random.normal(k1, (50, 2), dtype=jnp.float32)   # fc1.weight
    b1 = 0.05 * jax.random.uniform(k2, (50,), dtype=jnp.float32,
                                   minval=-1.0, maxval=1.0)        # fc1.bias
    w2 = 0.1 * jax.random.normal(k3, (3, 50), dtype=jnp.float32)   # out.weight
    b2 = 0.05 * jax.random.uniform(k4, (3,), dtype=jnp.float32,
                                   minval=-1.0, maxval=1.0)        # out.bias
    return w1, b1, w2, b2


def reference_forward(x, w1, b1, w2, b2):
    h = jnp.maximum(x @ w1.T + b1, 0.0)
    return h @ w2.T + b2


if __name__ == "__main__":
    key = jax.random.PRNGKey(0)
    pkey, xkey = jax.random.split(key)
    w1, b1, w2, b2 = init_params(pkey)

    # One-time parameter preparation (hoisted out of the per-call hot path).
    params = prepare_params(w1, b1, w2, b2)

    B = 8
    x = jax.random.normal(xkey, (B, 2), dtype=jnp.float32)  # state dim = 2

    out = net_forward(x, *params)
    out = jax.block_until_ready(out)

    ref = reference_forward(x, w1, b1, w2, b2)
    assert out.shape == (B, 3), out.shape
    assert jnp.allclose(out, ref, atol=1e-5, rtol=1e-5), (
        f"mismatch: max abs err = {jnp.max(jnp.abs(out - ref))}"
    )

    print("KERNEL_OK")
</pallas_src>

<mosaic_0001>
module attributes {stable_mosaic.version = 11 : i64} {
  func.func @_mlp_kernel(%arg0: i32, %arg1: memref<8x2xf32, #tpu.memory_space<vmem>>, %arg2: memref<2x64xf32, #tpu.memory_space<vmem>>, %arg3: memref<1x64xf32, #tpu.memory_space<vmem>>, %arg4: memref<64x8xf32, #tpu.memory_space<vmem>>, %arg5: memref<1x8xf32, #tpu.memory_space<vmem>>, %arg6: memref<8x8xf32, #tpu.memory_space<vmem>>) attributes {dimension_semantics = [#tpu.dimension_semantics<parallel>], iteration_bounds = array<i64: 1>, scalar_prefetch = 0 : i64, scratch_operands = 0 : i64, tpu.core_type = #tpu.core_type<tc>, window_params = [{transform_indices = @transform_0, window_bounds = array<i64: 8, 2>}, {pipeline_mode = #tpu.pipeline_mode<synchronous>, transform_indices = @transform_1, window_bounds = array<i64: 2, 64>}, {pipeline_mode = #tpu.pipeline_mode<synchronous>, transform_indices = @transform_2, window_bounds = array<i64: 1, 64>}, {pipeline_mode = #tpu.pipeline_mode<synchronous>, transform_indices = @transform_3, window_bounds = array<i64: 64, 8>}, {pipeline_mode = #tpu.pipeline_mode<synchronous>, transform_indices = @transform_4, window_bounds = array<i64: 1, 8>}, {transform_indices = @transform_5, window_bounds = array<i64: 8, 8>}]} {
    %c0 = arith.constant 0 : index
    %c0_0 = arith.constant 0 : index
    %0 = vector.load %arg1[%c0, %c0_0] : memref<8x2xf32, #tpu.memory_space<vmem>>, vector<8x2xf32>
    %c0_1 = arith.constant 0 : index
    %c0_2 = arith.constant 0 : index
    %1 = vector.load %arg2[%c0_1, %c0_2] : memref<2x64xf32, #tpu.memory_space<vmem>>, vector<2x64xf32>
    %2 = vector.extract_strided_slice %0 {offsets = [0, 0], sizes = [8, 1], strides = [1, 1]} : vector<8x2xf32> to vector<8x1xf32>
    %3 = vector.extract_strided_slice %1 {offsets = [0, 0], sizes = [1, 64], strides = [1, 1]} : vector<2x64xf32> to vector<1x64xf32>
    %4 = vector.broadcast %2 : vector<8x1xf32> to vector<8x64xf32>
    %5 = vector.broadcast %3 : vector<1x64xf32> to vector<8x64xf32>
    %6 = arith.mulf %4, %5 : vector<8x64xf32>
    %7 = vector.extract_strided_slice %0 {offsets = [0, 1], sizes = [8, 1], strides = [1, 1]} : vector<8x2xf32> to vector<8x1xf32>
    %8 = vector.extract_strided_slice %1 {offsets = [1, 0], sizes = [1, 64], strides = [1, 1]} : vector<2x64xf32> to vector<1x64xf32>
    %9 = vector.broadcast %7 : vector<8x1xf32> to vector<8x64xf32>
    %10 = vector.broadcast %8 : vector<1x64xf32> to vector<8x64xf32>
    %11 = arith.mulf %9, %10 : vector<8x64xf32>
    %12 = arith.addf %6, %11 : vector<8x64xf32>
    %c0_3 = arith.constant 0 : index
    %c0_4 = arith.constant 0 : index
    %13 = vector.load %arg3[%c0_3, %c0_4] : memref<1x64xf32, #tpu.memory_space<vmem>>, vector<1x64xf32>
    %14 = vector.broadcast %13 : vector<1x64xf32> to vector<8x64xf32>
    %15 = arith.addf %12, %14 : vector<8x64xf32>
    %cst = arith.constant 0.000000e+00 : f32
    %16 = vector.broadcast %cst : f32 to vector<8x64xf32>
    %17 = arith.maximumf %15, %16 : vector<8x64xf32>
    %c0_5 = arith.constant 0 : index
    %c0_6 = arith.constant 0 : index
    %18 = vector.load %arg4[%c0_5, %c0_6] : memref<64x8xf32, #tpu.memory_space<vmem>>, vector<64x8xf32>
    %cst_7 = arith.constant dense<0.000000e+00> : vector<8x8xf32>
    %19 = tpu.matmul %17, %18, %cst_7 {dimension_numbers = #tpu.dot_dimension_numbers<[1], [0], [0], [1], [0, 0, 1, 1], [], []>} : vector<8x64xf32>, vector<64x8xf32>, vector<8x8xf32> -> vector<8x8xf32>
    %c0_8 = arith.constant 0 : index
    %c0_9 = arith.constant 0 : index
    %20 = vector.load %arg5[%c0_8, %c0_9] : memref<1x8xf32, #tpu.memory_space<vmem>>, vector<1x8xf32>
    %21 = vector.broadcast %20 : vector<1x8xf32> to vector<8x8xf32>
    %22 = arith.addf %19, %21 : vector<8x8xf32>
    %c0_10 = arith.constant 0 : index
    %c0_11 = arith.constant 0 : index
    %23 = vector.load %arg6[%c0_10, %c0_11] : memref<8x8xf32, #tpu.memory_space<vmem>>, vector<8x8xf32>
    tpu.vector_store %arg6[%c0_10, %c0_11], %22 {strides = array<i32>} : memref<8x8xf32, #tpu.memory_space<vmem>>, vector<8x8xf32>,
    return
  }
  func.func @transform_0(%arg0: i32) -> (i32, i32) {
    %c0_i32 = arith.constant 0 : i32
    %c0_i32_0 = arith.constant 0 : i32
    return %arg0, %c0_i32 : i32, i32
  }
  func.func @transform_1(%arg0: i32) -> (i32, i32) {
    %c0_i32 = arith.constant 0 : i32
    %c0_i32_0 = arith.constant 0 : i32
    %c0_i32_1 = arith.constant 0 : i32
    return %c0_i32, %c0_i32_0 : i32, i32
  }
  func.func @transform_2(%arg0: i32) -> (i32, i32) {
    %c0_i32 = arith.constant 0 : i32
    %c0_i32_0 = arith.constant 0 : i32
    %c0_i32_1 = arith.constant 0 : i32
    return %c0_i32, %c0_i32_0 : i32, i32
  }
  func.func @transform_3(%arg0: i32) -> (i32, i32) {
    %c0_i32 = arith.constant 0 : i32
    %c0_i32_0 = arith.constant 0 : i32
    %c0_i32_1 = arith.constant 0 : i32
    return %c0_i32, %c0_i32_0 : i32, i32
  }
  func.func @transform_4(%arg0: i32) -> (i32, i32) {
    %c0_i32 = arith.constant 0 : i32
    %c0_i32_0 = arith.constant 0 : i32
    %c0_i32_1 = arith.constant 0 : i32
    return %c0_i32, %c0_i32_0 : i32, i32
  }
  func.func @transform_5(%arg0: i32) -> (i32, i32) {
    %c0_i32 = arith.constant 0 : i32
    %c0_i32_0 = arith.constant 0 : i32
    return %arg0, %c0_i32 : i32, i32
  }
}

</mosaic_0001>

<llo_original>
// kernel: net_forward.1
$region0: #{net_forward.1}
  #allocation0 [shape = 'u32[]', space=smem, size = 0x4, offset = 0x4, fixed_abs, tag = 'smem constant byte address 0x4 - core index']
  #allocation1 [shape = 'u32[72,128]{1,0:T(1,128)}', space=vmem, size = 0x9000, scoped, tag = 'internal scratch']
  %s0 = inlined_call_operand.vmem [shape: f32[8,2], index: 0, kind: input, shape index: {}]
  %s1 = inlined_call_operand.vmem [shape: f32[2,64], index: 1, kind: input, shape index: {}]
  %s2 = inlined_call_operand.vmem [shape: f32[1,64], index: 2, kind: input, shape index: {}]
  %s3 = inlined_call_operand.vmem [shape: f32[64,8], index: 3, kind: input, shape index: {}]
  %s4 = inlined_call_operand.vmem [shape: f32[1,8], index: 4, kind: input, shape index: {}]
  %s5 = inlined_call_operand.vmem [shape: f32[8,8], index: 5, kind: output, shape index: {}]
  %s6 = sld [smem:[#allocation0]]
  $region30: #{net_forward.1} parent=0
    _
  %s8 = ssub.s32 1, %s6
  %s9 = scalar_select 0, %s8, %s6
  // Predicated region
  $region2: #{net_forward.1} parent=0 // pred_check
    _
  $region3: #{net_forward.1} parent=0 // pred_check_branch
    %11 = sbr.rel (0) target = $region5
  $region4: #{net_forward.1} parent=0 // pred_region
    _
  $region5: #{net_forward.1} parent=0 // pred_fallthru
    _
  // Predicated region
  $region6: #{net_forward.1} parent=0 // pred_check
    _
  $region7: #{net_forward.1} parent=0 // pred_check_branch
    %13 = sbr.rel (0) target = $region9
  $region8: #{net_forward.1} parent=0 // pred_region
    _
  $region9: #{net_forward.1} parent=0 // pred_fallthru
    _
  // Predicated region
  $region10: #{net_forward.1} parent=0 // pred_check
    _
  $region11: #{net_forward.1} parent=0 // pred_check_branch
    %15 = sbr.rel (0) target = $region13
  $region12: #{net_forward.1} parent=0 // pred_region
    _
  $region13: #{net_forward.1} parent=0 // pred_fallthru
    _
  // Predicated region
  $region14: #{net_forward.1} parent=0 // pred_check
    _
  $region15: #{net_forward.1} parent=0 // pred_check_branch
    %17 = sbr.rel (0) target = $region17
  $region16: #{net_forward.1} parent=0 // pred_region
    _
  $region17: #{net_forward.1} parent=0 // pred_fallthru
    _
  // Predicated region
  $region18: #{net_forward.1} parent=0 // pred_check
    _
  $region19: #{net_forward.1} parent=0 // pred_check_branch
    %19 = sbr.rel (0) target = $region21
  $region20: #{net_forward.1} parent=0 // pred_region
    _
  $region21: #{net_forward.1} parent=0 // pred_fallthru
    _
  %v20 = vld [vmem:[%s0] sm:$0xff]
  %v21 = vld [vmem:[%s1] sm:$0x3]
  %23 = vset.pattern.permute.xlu0 0
  %24 = vperm.xlu0 %23, %v20
  %v25 = vpop.permute.xlu0 %24
  %v27 = vperm.slane %v21, 0
  %v28 = vmul.f32 %v25, %v27
  %29 = vset.pattern.permute.xlu0 1
  %30 = vperm.xlu0 %29, %v20
  %v31 = vpop.permute.xlu0 %30
  %v33 = vperm.slane %v21, 1
  %v34 = vmul.f32 %v31, %v33
  %v35 = vadd.f32 %v28, %v34
  %v36 = vld [vmem:[%s2] sm:$0x1]
  %v38 = vperm.slane %v36, 0
  %v40 = vadd.f32 %v35, %v38
  %v41 = vmax.f32 %v40, 0.0
  %v42 = vld [vmem:[%s3] sm:$0xff]
  %v43 = vld [vmem:[%s3 + $0x8] sm:$0xff]
  %v44 = vld [vmem:[%s3 + $0x10] sm:$0xff]
  %v45 = vld [vmem:[%s3 + $0x18] sm:$0xff]
  %v46 = vld [vmem:[%s3 + $0x20] sm:$0xff]
  %v47 = vld [vmem:[%s3 + $0x28] sm:$0xff]
  %v48 = vld [vmem:[%s3 + $0x30] sm:$0xff]
  %v49 = vld [vmem:[%s3 + $0x38] sm:$0xff]
  %v50 = vld [vmem:[%s4] sm:$0x1]
  %v52 = vperm.slane %v50, 0
  %vm54 = vcmask 523264
  %v56 = vsel %vm54, %v41, 0
  %58 = vmatpush.msra.mxu0 0.0
  %59 = vmatpush.msra.mxu0 0.0
  %60 = vmatpush.msra.mxu0 0.0
  %61 = vmatpush.msra.mxu0 0.0
  %62 = vmatpush.msra.mxu0 0.0
  %63 = vmatpush.msra.mxu0 0.0
  %64 = vmatpush.msra.mxu0 0.0
  %65 = vmatpush.msra.mxu0 0.0
  %66 = vmatpush.msra.mxu0 %v49
  %67 = vmatpush.msra.mxu0 %v48
  %68 = vmatpush.msra.mxu0 %v47
  %69 = vmatpush.msra.mxu0 %v46
  %70 = vmatpush.msra.mxu0 %v45
  %71 = vmatpush.msra.mxu0 %v44
  %72 = vmatpush.msra.mxu0 %v43
  %73 = vmatpush.msra.mxu0 %v42
  %74 = vmatmul.f32.gmra.mxu0 %v56
  %v75 = vpop.f32.mrf.mxu0
  %v76 = vadd.f32 %v52, %v75
  %77 = vdwg.mxu0
  %vm78 = vcmask 64512
  %79 = vst.msk [vmem:[%s5] sm:$0xff] %vm78, %v76
  // Predicated region
  $region22: #{net_forward.1} parent=0 // pred_check
    _
  $region23: #{net_forward.1} parent=0 // pred_check_branch
    %81 = sbr.rel (0) target = $region25
  $region24: #{net_forward.1} parent=0 // pred_region
    _
  $region25: #{net_forward.1} parent=0 // pred_fallthru
    _
  // Predicated region
  $region26: #{net_forward.1} parent=0 // pred_check
    _
  $region27: #{net_forward.1} parent=0 // pred_check_branch
    %83 = sbr.rel (0) target = $region29
  $region28: #{net_forward.1} parent=0 // pred_region
    _
  $region29: #{net_forward.1} parent=0 // pred_fallthru
    _

</llo_original>
